<compile_context>
chip_gen: v6e
topology: v6e:2x2x1
jax: 0.10.0
libtpu: 0.0.40
codegen_flags: <defaults>
</compile_context>

<pallas_src>
import functools

import jax
import jax.numpy as jnp
from jax.experimental import pallas as pl
from jax.experimental.pallas import tpu as pltpu

_MAX_CORES = 2                      # v7x has 2 TensorCores; harmless on v5e/v6e
_MIN_TILES = 4                      # give each core >= 2 tiles when the data allows
_PALLAS_MIN_ELEMENTS = 1 << 15      # below this, XLA's fused reduce wins
_NUM_PIPELINE_BUFFERS = 2           # keep plain double-buffering


# --------------------------------------------------------------------------- #
# Kernel
# --------------------------------------------------------------------------- #
def _fused_sse_kernel(a1_ref, b1_ref, a2_ref, b2_ref, o1_ref, o2_ref, *,
                      tiles_per_core, pair1, pair2):
    """Accumulate per-lane partial sums of (a - b)^2 for two independent pairs.

    pairN = (num_tiles, last_tile_valid_slabs)  -- static ints.
    Input blocks are (g_block, R, L) views (R, L = the array's own trailing dims).
    oN_ref is a (1, 1, L) VMEM-resident accumulator block, one per core.
    """
    p = pl.program_id(0)              # core slot        ("parallel" axis)
    i = pl.program_id(1)              # tile within core ("arbitrary" axis)
    t = p * tiles_per_core + i        # global tile index

    @pl.when(i == 0)
    def _init():
        o1_ref[...] = jnp.zeros_like(o1_ref)
        o2_ref[...] = jnp.zeros_like(o2_ref)

    def _accum(a_ref, b_ref, o_ref, spec):
        num_tiles, last_valid = spec
        g_block = a_ref.shape[0]

        def _body(n_valid):
            # Upcast inside the kernel (no extra HBM pass in the wrapper).
            d = (a_ref[pl.ds(0, n_valid), :, :].astype(jnp.float32)
                 - b_ref[pl.ds(0, n_valid), :, :].astype(jnp.float32))
            sq = d * d
            s = jnp.sum(sq, axis=0)                            # over slabs (VPU)
            # Cross-sublane reduce to a lane vector; hidden under DMA.
            o_ref[...] += jnp.sum(s, axis=0, keepdims=True).reshape(1, 1, -1)

        if last_valid == g_block:
            # No ragged tail: every in-range tile takes the full-block path.
            @pl.when(t < num_tiles)
            def _():
                _body(g_block)
        else:
            # Ragged tail: only the FINAL tile of this pair processes fewer
            # slabs (static slice, no iota/where mask); all other tiles stay
            # on the plain full-block path.
            @pl.when(t < num_tiles - 1)
            def _():
                _body(g_block)

            @pl.when(t == num_tiles - 1)
            def _():
                _body(last_valid)

    _accum(a1_ref, b1_ref, o1_ref, pair1)
    _accum(a2_ref, b2_ref, o2_ref, pair2)


# --------------------------------------------------------------------------- #
# Tiling / VMEM planning (all static, trace-time Python)
# --------------------------------------------------------------------------- #
def _as_3d(x):
    """View x as (slabs, R, L) by collapsing leading dims only.

    Collapsing dims *before* the tiled trailing two is always layout-preserving,
    so no relayout copy is inserted ahead of the pallas_call.
    """
    if x.ndim >= 3:
        return x.reshape(-1, x.shape[-2], x.shape[-1])
    if x.ndim == 2:
        return x.reshape(1, x.shape[0], x.shape[1])
    return x.reshape(1, 1, -1)


def _cdiv(a, b):
    return -(-a // b)


def _round_up(n, m):
    return _cdiv(n, m) * m


def _slab_vmem_bytes(shape3d, dtypes):
    """Conservative VMEM bytes for ONE (1, R, L) slab of both arrays in a pair."""
    _, r, l = shape3d
    rpad = _round_up(r, 32)            # covers 8/16/32-row sublane packing
    lpad = _round_up(l, 128)
    return rpad * lpad * sum(jnp.dtype(d).itemsize for d in dtypes)


def _vmem_plan():
    """(input double-buffer budget, vmem_limit_bytes) for this chip generation."""
    try:
        phys = int(pltpu.get_tpu_info().vmem_capacity_bytes)
    except Exception:
        phys = 64 << 20                 # assume the smallest current gen (v7x)
    if phys >= (100 << 20):             # v5e / v6e: 128 MiB physical VMEM
        return 32 << 20, 96 << 20       # ~4 MiB per input block
    if phys >= (48 << 20):              # v7x: 64 MiB physical per TensorCore
        return 40 << 20, 56 << 20       # ~5 MiB per input block
    # Unknown / small-VMEM part: stay well inside whatever we have.
    return max(4 << 20, phys // 3), max(8 << 20, phys * 3 // 4)


def _pick_num_tiles(g1, sb1, g2, sb2, budget):
    """Smallest common tile count T so double-buffered blocks of BOTH pairs fit.

    Per grid step VMEM = _NUM_PIPELINE_BUFFERS * (ceil(g1/T)*sb1 + ceil(g2/T)*sb2).
    Returns None if even one slab per pair does not fit (caller falls back).
    """
    def fits(t):
        return _NUM_PIPELINE_BUFFERS * (
            _cdiv(g1, t) * sb1 + _cdiv(g2, t) * sb2) <= budget

    gmax = max(g1, g2)
    if not fits(gmax):                  # single-slab blocks already too big
        return None
    lo = min(gmax, max(1, _cdiv(_NUM_PIPELINE_BUFFERS * (g1 * sb1 + g2 * sb2),
                                budget)))
    if fits(lo):
        return lo
    hi = gmax                           # known feasible; fits() monotone in T
    while lo < hi:
        mid = (lo + hi) // 2
        if fits(mid):
            hi = mid
        else:
            lo = mid + 1
    return lo


def _pair_tiling(g, t):
    g_block = _cdiv(g, t)
    num_tiles = _cdiv(g, g_block)
    last_valid = g - (num_tiles - 1) * g_block
    return g_block, num_tiles, last_valid


# --------------------------------------------------------------------------- #
# Fused SSE via Pallas
# --------------------------------------------------------------------------- #
def _fused_sse(a1, b1, a2, b2):
    """Return (sum((a1-b1)^2), sum((a2-b2)^2)) from one Pallas kernel,
    or None if the shapes don't fit the tiling scheme (caller uses XLA)."""
    assert a1.shape == b1.shape and a2.shape == b2.shape

    a1_3d, b1_3d = _as_3d(a1), _as_3d(b1)
    a2_3d, b2_3d = _as_3d(a2), _as_3d(b2)
    g1, r1, l1 = a1_3d.shape
    g2, r2, l2 = a2_3d.shape

    budget, vmem_limit = _vmem_plan()
    sb1 = _slab_vmem_bytes(a1_3d.shape, (a1.dtype, b1.dtype))
    sb2 = _slab_vmem_bytes(a2_3d.shape, (a2.dtype, b2.dtype))

    t_tiles = _pick_num_tiles(g1, sb1, g2, sb2, budget)
    if t_tiles is None:
        return None                    # a single slab exceeds the VMEM budget

    gmax = max(g1, g2)
    # v7x guard: give each TensorCore on the "parallel" axis >= 2 tiles and an
    # even split whenever the data allows it.
    t_tiles = max(t_tiles, min(_MIN_TILES, gmax))
    if t_tiles < gmax and t_tiles % _MAX_CORES:
        t_tiles += 1

    gb1, nt1, valid1 = _pair_tiling(g1, t_tiles)
    gb2, nt2, valid2 = _pair_tiling(g2, t_tiles)

    grid_tiles = max(nt1, nt2)
    ncores = min(_MAX_CORES, grid_tiles)
    tiles_per_core = pl.cdiv(grid_tiles, ncores)

    def _in_map(num_tiles):
        def idx(p, i):
            t = p * tiles_per_core + i
            # Past-the-end steps (shorter pair / core-split padding) clamp to the
            # last valid block: compute is pl.when-guarded and Pallas skips
            # re-DMA of an unchanged block index.
            return (jnp.minimum(t, num_tiles - 1), 0, 0)
        return idx

    def _out_map(p, i):
        return (p, 0, 0)

    kernel = functools.partial(
        _fused_sse_kernel,
        tiles_per_core=tiles_per_core,
        pair1=(nt1, valid1),
        pair2=(nt2, valid2),
    )

    out1, out2 = pl.pallas_call(
        kernel,
        out_shape=(
            jax.ShapeDtypeStruct((ncores, 1, l1), jnp.float32),
            jax.ShapeDtypeStruct((ncores, 1, l2), jnp.float32),
        ),
        grid=(ncores, tiles_per_core),
        in_specs=[
            pl.BlockSpec((gb1, r1, l1), _in_map(nt1)),
            pl.BlockSpec((gb1, r1, l1), _in_map(nt1)),
            pl.BlockSpec((gb2, r2, l2), _in_map(nt2)),
            pl.BlockSpec((gb2, r2, l2), _in_map(nt2)),
        ],
        out_specs=(
            pl.BlockSpec((1, 1, l1), _out_map),
            pl.BlockSpec((1, 1, l2), _out_map),
        ),
        compiler_params=pltpu.CompilerParams(
            dimension_semantics=("parallel", "arbitrary"),
            vmem_limit_bytes=vmem_limit),
    )(a1_3d, b1_3d, a2_3d, b2_3d)

    # Tiny final reduction over per-core / per-lane partials.
    return jnp.sum(out1), jnp.sum(out2)


def _sse_xla(a, b):
    return jnp.sum(jnp.square(a.astype(jnp.float32) - b.astype(jnp.float32)))


@functools.partial(jax.jit, static_argnames=("beta", "use_pallas"))
def vq_criterion(input, encoder_output, quantized, reconstruction,
                 beta=0.25, use_pallas=None):
    """Forward pass of VQCriterion.

    Returns (total_loss, reconstruction_loss, vq_loss, commitment_loss).
    vq_loss and commitment_loss only differ through stop-gradients, so their
    forward values are identical.
    """
    if use_pallas is None:
        use_pallas = (input.size + encoder_output.size) >= _PALLAS_MIN_ELEMENTS

    sse = None
    if use_pallas:
        sse = _fused_sse(input, reconstruction, encoder_output, quantized)
    if sse is None:
        # Tiny inputs (pallas_call fixed overhead dominates) or a single slab
        # larger than the VMEM budget: a fused XLA reduction is HBM-bound too.
        sse = (_sse_xla(input, reconstruction),
               _sse_xla(encoder_output, quantized))
    sse_rec, sse_vq = sse

    reconstruction_loss = sse_rec / jnp.float32(input.size)
    vq_loss = sse_vq / jnp.float32(encoder_output.size)
    commitment_loss = vq_loss
    total_loss = reconstruction_loss + vq_loss + beta * commitment_loss
    return total_loss, reconstruction_loss, vq_loss, commitment_loss


if __name__ == "__main__":
    beta = 0.25

    def _reference(x, enc, quant, recon):
        rec = jnp.mean(jnp.square(x.astype(jnp.float32) - recon.astype(jnp.float32)))
        vq = jnp.mean(jnp.square(enc.astype(jnp.float32) - quant.astype(jnp.float32)))
        return rec + vq + beta * vq, rec, vq, vq

    def _check(x, enc, quant, recon, use_pallas=True):
        got = vq_criterion(x, enc, quant, recon, beta=beta, use_pallas=use_pallas)
        jax.block_until_ready(got)
        want = _reference(x, enc, quant, recon)
        for g, w in zip(got, want):
            assert jnp.allclose(g, w, rtol=1e-5, atol=1e-6), (g, w)
        return got

    k1, k2, k3, k4, k5, k6, k7, k8 = jax.random.split(jax.random.PRNGKey(0), 8)

    # --- Small shapes consistent with the module (forced Pallas path). ---
    B, C, H, W, D = 2, 3, 16, 16, 8
    x = jax.random.normal(k1, (B, C, H, W), dtype=jnp.float32)
    recon = jax.random.normal(k2, (B, C, H, W), dtype=jnp.float32)
    enc = jax.random.normal(k3, (B, H, W, D), dtype=jnp.float32)
    quant = enc + 0.1 * jax.random.normal(k4, (B, H, W, D), dtype=jnp.float32)
    forced = _check(x, enc, quant, recon, use_pallas=True)

    # --- Larger shapes: multiple tiles per core, ragged final slab tile
    #     (static-slice tail path), bf16 pair (in-kernel upcast), 2-way split. ---
    B2, C2, H2, W2, D2 = 3, 5, 72, 72, 24
    x2 = jax.random.normal(k5, (B2, C2, H2, W2), dtype=jnp.float32)
    recon2 = jax.random.normal(k6, (B2, C2, H2, W2), dtype=jnp.float32)
    enc2 = jax.random.normal(k7, (B2, H2, W2, D2), dtype=jnp.bfloat16)
    quant2 = (enc2.astype(jnp.float32)
              + 0.1 * jax.random.normal(k8, (B2, H2, W2, D2), dtype=jnp.float32)
              ).astype(jnp.bfloat16)
    _check(x2, enc2, quant2, recon2, use_pallas=True)

    # --- Auto path: tiny inputs fall back to the plain fused XLA reduction. ---
    auto = vq_criterion(x, enc, quant, recon, beta=beta)
    jax.block_until_ready(auto)
    assert all(jnp.allclose(a, f, rtol=1e-5, atol=1e-6) for a, f in zip(auto, forced))

    print("KERNEL_OK")
</pallas_src>

<mosaic_0001>
module attributes {stable_mosaic.version = 11 : i64} {
  func.func @_fused_sse_kernel(%arg0: i32, %arg1: i32, %arg2: memref<2x16x16xf32, #tpu.memory_space<vmem>>, %arg3: memref<2x16x16xf32, #tpu.memory_space<vmem>>, %arg4: memref<8x16x8xf32, #tpu.memory_space<vmem>>, %arg5: memref<8x16x8xf32, #tpu.memory_space<vmem>>, %arg6: memref<1x1x16xf32, #tpu.memory_space<vmem>>, %arg7: memref<1x1x8xf32, #tpu.memory_space<vmem>>) attributes {dimension_semantics = [#tpu.dimension_semantics<parallel>, #tpu.dimension_semantics<arbitrary>], iteration_bounds = array<i64: 2, 2>, scalar_prefetch = 0 : i64, scratch_operands = 0 : i64, tpu.core_type = #tpu.core_type<tc>, window_params = [{transform_indices = @transform_0, window_bounds = array<i64: 2, 16, 16>}, {transform_indices = @transform_1, window_bounds = array<i64: 2, 16, 16>}, {transform_indices = @transform_2, window_bounds = array<i64: 8, 16, 8>}, {transform_indices = @transform_3, window_bounds = array<i64: 8, 16, 8>}, {transform_indices = @transform_4, window_bounds = array<i64: 1, 1, 16>}, {transform_indices = @transform_5, window_bounds = array<i64: 1, 1, 8>}]} {
    %c2_i32 = arith.constant 2 : i32
    %0 = arith.muli %arg0, %c2_i32 : i32
    %1 = arith.addi %0, %arg1 : i32
    %c0_i32 = arith.constant 0 : i32
    %2 = arith.cmpi eq, %arg1, %c0_i32 : i32
    %3 = arith.extui %2 : i1 to i32
    %c0_i32_0 = arith.constant 0 : i32
    %4 = arith.cmpi ne, %3, %c0_i32_0 : i32
    scf.if %4 {
      %cst = arith.constant 0.000000e+00 : f32
      %11 = vector.broadcast %cst : f32 to vector<1x1x16xf32>
      %c0 = arith.constant 0 : index
      %c0_3 = arith.constant 0 : index
      %c0_4 = arith.constant 0 : index
      %12 = vector.load %arg6[%c0, %c0_3, %c0_4] : memref<1x1x16xf32, #tpu.memory_space<vmem>>, vector<1x1x16xf32>
      tpu.vector_store %arg6[%c0, %c0_3, %c0_4], %11 {strides = array<i32>} : memref<1x1x16xf32, #tpu.memory_space<vmem>>, vector<1x1x16xf32>,
      %cst_5 = arith.constant 0.000000e+00 : f32
      %13 = vector.broadcast %cst_5 : f32 to vector<1x1x8xf32>
      %c0_6 = arith.constant 0 : index
      %c0_7 = arith.constant 0 : index
      %c0_8 = arith.constant 0 : index
      %14 = vector.load %arg7[%c0_6, %c0_7, %c0_8] : memref<1x1x8xf32, #tpu.memory_space<vmem>>, vector<1x1x8xf32>
      tpu.vector_store %arg7[%c0_6, %c0_7, %c0_8], %13 {strides = array<i32>} : memref<1x1x8xf32, #tpu.memory_space<vmem>>, vector<1x1x8xf32>,
    } else {
    }
    %c3_i32 = arith.constant 3 : i32
    %5 = arith.cmpi slt, %1, %c3_i32 : i32
    %6 = arith.extui %5 : i1 to i32
    %c0_i32_1 = arith.constant 0 : i32
    %7 = arith.cmpi ne, %6, %c0_i32_1 : i32
    scf.if %7 {
      %c0 = arith.constant 0 : index
      %c0_3 = arith.constant 0 : index
      %c0_4 = arith.constant 0 : index
      %11 = vector.load %arg2[%c0, %c0_3, %c0_4] : memref<2x16x16xf32, #tpu.memory_space<vmem>>, vector<2x16x16xf32>
      %c0_5 = arith.constant 0 : index
      %c0_6 = arith.constant 0 : index
      %c0_7 = arith.constant 0 : index
      %12 = vector.load %arg3[%c0_5, %c0_6, %c0_7] : memref<2x16x16xf32, #tpu.memory_space<vmem>>, vector<2x16x16xf32>
      %13 = arith.subf %11, %12 : vector<2x16x16xf32>
      %14 = arith.mulf %13, %13 : vector<2x16x16xf32>
      %cst = arith.constant dense<0.000000e+00> : vector<16x16xf32>
      %15 = vector.multi_reduction <add>, %14, %cst [0] : vector<2x16x16xf32> to vector<16x16xf32>
      %c0_8 = arith.constant 0 : index
      %c0_9 = arith.constant 0 : index
      %c0_10 = arith.constant 0 : index
      %16 = vector.load %arg6[%c0_8, %c0_9, %c0_10] : memref<1x1x16xf32, #tpu.memory_space<vmem>>, vector<1x1x16xf32>
      %cst_11 = arith.constant dense<0.000000e+00> : vector<16xf32>
      %17 = vector.multi_reduction <add>, %15, %cst_11 [0] : vector<16x16xf32> to vector<16xf32>
      %18 = vector.shape_cast %17 : vector<16xf32> to vector<1x16xf32>
      %19 = vector.shape_cast %18 : vector<1x16xf32> to vector<1x1x16xf32>
      %20 = arith.addf %16, %19 : vector<1x1x16xf32>
      %c0_12 = arith.constant 0 : index
      %c0_13 = arith.constant 0 : index
      %c0_14 = arith.constant 0 : index
      %21 = vector.load %arg6[%c0_12, %c0_13, %c0_14] : memref<1x1x16xf32, #tpu.memory_space<vmem>>, vector<1x1x16xf32>
      tpu.vector_store %arg6[%c0_12, %c0_13, %c0_14], %20 {strides = array<i32>} : memref<1x1x16xf32, #tpu.memory_space<vmem>>, vector<1x1x16xf32>,
    } else {
    }
    %c4_i32 = arith.constant 4 : i32
    %8 = arith.cmpi slt, %1, %c4_i32 : i32
    %9 = arith.extui %8 : i1 to i32
    %c0_i32_2 = arith.constant 0 : i32
    %10 = arith.cmpi ne, %9, %c0_i32_2 : i32
    scf.if %10 {
      %c0 = arith.constant 0 : index
      %c0_3 = arith.constant 0 : index
      %c0_4 = arith.constant 0 : index
      %11 = vector.load %arg4[%c0, %c0_3, %c0_4] : memref<8x16x8xf32, #tpu.memory_space<vmem>>, vector<8x16x8xf32>
      %c0_5 = arith.constant 0 : index
      %c0_6 = arith.constant 0 : index
      %c0_7 = arith.constant 0 : index
      %12 = vector.load %arg5[%c0_5, %c0_6, %c0_7] : memref<8x16x8xf32, #tpu.memory_space<vmem>>, vector<8x16x8xf32>
      %13 = arith.subf %11, %12 : vector<8x16x8xf32>
      %14 = arith.mulf %13, %13 : vector<8x16x8xf32>
      %cst = arith.constant dense<0.000000e+00> : vector<16x8xf32>
      %15 = vector.multi_reduction <add>, %14, %cst [0] : vector<8x16x8xf32> to vector<16x8xf32>
      %c0_8 = arith.constant 0 : index
      %c0_9 = arith.constant 0 : index
      %c0_10 = arith.constant 0 : index
      %16 = vector.load %arg7[%c0_8, %c0_9, %c0_10] : memref<1x1x8xf32, #tpu.memory_space<vmem>>, vector<1x1x8xf32>
      %cst_11 = arith.constant dense<0.000000e+00> : vector<8xf32>
      %17 = vector.multi_reduction <add>, %15, %cst_11 [0] : vector<16x8xf32> to vector<8xf32>
      %18 = vector.shape_cast %17 : vector<8xf32> to vector<1x8xf32>
      %19 = vector.shape_cast %18 : vector<1x8xf32> to vector<1x1x8xf32>
      %20 = arith.addf %16, %19 : vector<1x1x8xf32>
      %c0_12 = arith.constant 0 : index
      %c0_13 = arith.constant 0 : index
      %c0_14 = arith.constant 0 : index
      %21 = vector.load %arg7[%c0_12, %c0_13, %c0_14] : memref<1x1x8xf32, #tpu.memory_space<vmem>>, vector<1x1x8xf32>
      tpu.vector_store %arg7[%c0_12, %c0_13, %c0_14], %20 {strides = array<i32>} : memref<1x1x8xf32, #tpu.memory_space<vmem>>, vector<1x1x8xf32>,
    } else {
    }
    return
  }
  func.func @transform_0(%arg0: i32, %arg1: i32) -> (i32, i32, i32) {
    %c2_i32 = arith.constant 2 : i32
    %0 = arith.muli %arg0, %c2_i32 : i32
    %1 = arith.addi %0, %arg1 : i32
    %c2_i32_0 = arith.constant 2 : i32
    %2 = arith.minsi %1, %c2_i32_0 : i32
    %c0_i32 = arith.constant 0 : i32
    %c0_i32_1 = arith.constant 0 : i32
    %c0_i32_2 = arith.constant 0 : i32
    return %2, %c0_i32, %c0_i32_1 : i32, i32, i32
  }
  func.func @transform_1(%arg0: i32, %arg1: i32) -> (i32, i32, i32) {
    %c2_i32 = arith.constant 2 : i32
    %0 = arith.muli %arg0, %c2_i32 : i32
    %1 = arith.addi %0, %arg1 : i32
    %c2_i32_0 = arith.constant 2 : i32
    %2 = arith.minsi %1, %c2_i32_0 : i32
    %c0_i32 = arith.constant 0 : i32
    %c0_i32_1 = arith.constant 0 : i32
    %c0_i32_2 = arith.constant 0 : i32
    return %2, %c0_i32, %c0_i32_1 : i32, i32, i32
  }
  func.func @transform_2(%arg0: i32, %arg1: i32) -> (i32, i32, i32) {
    %c2_i32 = arith.constant 2 : i32
    %0 = arith.muli %arg0, %c2_i32 : i32
    %1 = arith.addi %0, %arg1 : i32
    %c3_i32 = arith.constant 3 : i32
    %2 = arith.minsi %1, %c3_i32 : i32
    %c0_i32 = arith.constant 0 : i32
    %c0_i32_0 = arith.constant 0 : i32
    %c0_i32_1 = arith.constant 0 : i32
    return %2, %c0_i32, %c0_i32_0 : i32, i32, i32
  }
  func.func @transform_3(%arg0: i32, %arg1: i32) -> (i32, i32, i32) {
    %c2_i32 = arith.constant 2 : i32
    %0 = arith.muli %arg0, %c2_i32 : i32
    %1 = arith.addi %0, %arg1 : i32
    %c3_i32 = arith.constant 3 : i32
    %2 = arith.minsi %1, %c3_i32 : i32
    %c0_i32 = arith.constant 0 : i32
    %c0_i32_0 = arith.constant 0 : i32
    %c0_i32_1 = arith.constant 0 : i32
    return %2, %c0_i32, %c0_i32_0 : i32, i32, i32
  }
  func.func @transform_4(%arg0: i32, %arg1: i32) -> (i32, i32, i32) {
    %c0_i32 = arith.constant 0 : i32
    %c0_i32_0 = arith.constant 0 : i32
    %c0_i32_1 = arith.constant 0 : i32
    return %arg0, %c0_i32, %c0_i32_0 : i32, i32, i32
  }
  func.func @transform_5(%arg0: i32, %arg1: i32) -> (i32, i32, i32) {
    %c0_i32 = arith.constant 0 : i32
    %c0_i32_0 = arith.constant 0 : i32
    %c0_i32_1 = arith.constant 0 : i32
    return %arg0, %c0_i32, %c0_i32_0 : i32, i32, i32
  }
}

</mosaic_0001>

<llo_original>
// kernel: vq_criterion.1
$region0: #{vq_criterion.1}
  #allocation0 [shape = 'u32[]', space=smem, size = 0x4, offset = 0x4, fixed_abs, tag = 'smem constant byte address 0x4 - core index']
  #allocation1 [shape = 'u32[144,128]{1,0:T(1,128)}', space=vmem, size = 0x12000, scoped, tag = 'internal scratch']
  %s0 = inlined_call_operand.vmem [shape: f32[6,16,16], index: 0, kind: input, shape index: {}]
  %s1 = inlined_call_operand.vmem [shape: f32[6,16,16], index: 1, kind: input, shape index: {}]
  %s2 = inlined_call_operand.vmem [shape: f32[32,16,8], index: 2, kind: input, shape index: {}]
  %s3 = inlined_call_operand.vmem [shape: f32[32,16,8], index: 3, kind: input, shape index: {}]
  %s4 = inlined_call_operand.vmem [shape: f32[2,1,16], index: 4, kind: output, shape index: {0}]
  %s5 = inlined_call_operand.vmem [shape: f32[2,1,8], index: 5, kind: output, shape index: {1}]
  %6 = xla_tuple %s4, %s5
  %s7 = sld [smem:[#allocation0]]
  $region69: #{vq_criterion.1} parent=0
    _
  %s9 = ssub.s32 1, %s7
  %s10 = scalar_select 0, %s9, %s7
  loop: start=0, step=1, limit=6
  $region2: #{vq_criterion.1} parent=0 // loop_pre_header
    _
  $region3: #{vq_criterion.1} parent=0 // loop_header
    %s12 = sphi 0, %s16
    %p13 = scmp.ge.s32.totalorder %s12, 6
    %s19 = sphi 0, %s31
    %s20 = sphi 0, %s27
    %s21 = sphi 0, %s19
    %s22 = sphi 0, %s20
    %s23 = sphi 0, %s21
    %s24 = sphi 0, %s22
    %s42 = sphi 0, %s44
    %s45 = sphi 0, %s42
    %s46 = sphi 0, %s45
    %s62 = sphi 0, %s46
    %s76 = sphi 0, %s78
    %s79 = sphi 0, %s76
    %s80 = sphi 0, %s79
    %s96 = sphi 0, %s80
    %s110 = sphi 0, %s112
    %s113 = sphi 0, %s110
    %s114 = sphi 0, %s113
    %s130 = sphi 0, %s114
    %s144 = sphi 0, %s146
    %s147 = sphi 0, %s144
    %s148 = sphi 0, %s147
    %s164 = sphi 0, %s148
    %s170 = sphi 0, %s172
    %s173 = sphi 0, %s170
    %s174 = sphi 0, %s173
    %s190 = sphi 0, %s174
    %s196 = sphi 0, %s198
    %s199 = sphi 0, %s196
    %s200 = sphi 0, %s199
    %s216 = sphi 0, %s200
  $region4: #{vq_criterion.1} parent=0 // loop_header_branch
    %15 = sbr.rel (%p13) target = $region8
  $region5: #{vq_criterion.1} parent=0 // loop_body
    %s17 = ssub.s32 %s12, 1
    %s18 = ssub.s32 %s12, 2
    %s25 = sadd.s32 1, %s20
    %p26 = scmp.ge.s32.totalorder %s25, 2
    %s27 = scalar_select %p26, 0, %s25
    %s28 = sadd.s32 1, %s19
    %s29 = scalar_select %p26, %s28, %s19
    %p30 = scmp.ge.s32.totalorder %s29, 2
    %s31 = scalar_select %p30, 0, %s29
    %s32 = smul.u32 %s19, 2
    %s33 = sadd.s32 %s32, %s20
    %p34 = scmp.lt.s32.totalorder %s33, 2
    %s35 = scalar_select %p34, %s33, 2
    %s36 = smul.u32 %s31, 2
    %s37 = sadd.s32 %s36, %s27
    %p38 = scmp.lt.s32.totalorder %s37, 2
    %s39 = scalar_select %p38, %s37, 2
    %s40 = ssub.s32 %s35, %s39
    %p41 = scmp.eq.s32.totalorder %s40, 0
    %s43 = sadd.s32 %s42, 1
    %s44 = scalar_select %p41, %s42, %s43
    %p47 = pneg %p41
    %p48 = scmp.eq.s32.totalorder %s12, 3
    %p49 = por %p47, %p48
    %p50 = scmp.ne.s32.totalorder %s42, %s45
    %p51 = scmp.eq.s32.totalorder %s12, 0
    %p52 = por %p50, %p51
    %p53 = scmp.ne.s32.totalorder %s42, %s45
    %p54 = scmp.eq.s32.totalorder %s17, 3
    %p55 = por %p53, %p54
    %p56 = scmp.ne.s32.totalorder %s45, %s46
    %p57 = scmp.eq.s32.totalorder %s17, 0
    %p58 = por %p56, %p57
    %p59 = scmp.ne.s32.totalorder %s45, %s46
    %p60 = scmp.eq.s32.totalorder %s18, 3
    %p61 = por %p59, %p60
    %p63 = scmp.ne.s32.totalorder %s46, %s62
    %p64 = scmp.eq.s32.totalorder %s18, 0
    %p65 = por %p63, %p64
    %s66 = smul.u32 %s19, 2
    %s67 = sadd.s32 %s66, %s20
    %p68 = scmp.lt.s32.totalorder %s67, 2
    %s69 = scalar_select %p68, %s67, 2
    %s70 = smul.u32 %s31, 2
    %s71 = sadd.s32 %s70, %s27
    %p72 = scmp.lt.s32.totalorder %s71, 2
    %s73 = scalar_select %p72, %s71, 2
    %s74 = ssub.s32 %s69, %s73
    %p75 = scmp.eq.s32.totalorder %s74, 0
    %s77 = sadd.s32 %s76, 1
    %s78 = scalar_select %p75, %s76, %s77
    %p81 = pneg %p75
    %p82 = scmp.eq.s32.totalorder %s12, 3
    %p83 = por %p81, %p82
    %p84 = scmp.ne.s32.totalorder %s76, %s79
    %p85 = scmp.eq.s32.totalorder %s12, 0
    %p86 = por %p84, %p85
    %p87 = scmp.ne.s32.totalorder %s76, %s79
    %p88 = scmp.eq.s32.totalorder %s17, 3
    %p89 = por %p87, %p88
    %p90 = scmp.ne.s32.totalorder %s79, %s80
    %p91 = scmp.eq.s32.totalorder %s17, 0
    %p92 = por %p90, %p91
    %p93 = scmp.ne.s32.totalorder %s79, %s80
    %p94 = scmp.eq.s32.totalorder %s18, 3
    %p95 = por %p93, %p94
    %p97 = scmp.ne.s32.totalorder %s80, %s96
    %p98 = scmp.eq.s32.totalorder %s18, 0
    %p99 = por %p97, %p98
    %s100 = smul.u32 %s19, 2
    %s101 = sadd.s32 %s100, %s20
    %p102 = scmp.lt.s32.totalorder %s101, 3
    %s103 = scalar_select %p102, %s101, 3
    %s104 = smul.u32 %s31, 2
    %s105 = sadd.s32 %s104, %s27
    %p106 = scmp.lt.s32.totalorder %s105, 3
    %s107 = scalar_select %p106, %s105, 3
    %s108 = ssub.s32 %s103, %s107
    %p109 = scmp.eq.s32.totalorder %s108, 0
    %s111 = sadd.s32 %s110, 1
    %s112 = scalar_select %p109, %s110, %s111
    %p115 = pneg %p109
    %p116 = scmp.eq.s32.totalorder %s12, 3
    %p117 = por %p115, %p116
    %p118 = scmp.ne.s32.totalorder %s110, %s113
    %p119 = scmp.eq.s32.totalorder %s12, 0
    %p120 = por %p118, %p119
    %p121 = scmp.ne.s32.totalorder %s110, %s113
    %p122 = scmp.eq.s32.totalorder %s17, 3
    %p123 = por %p121, %p122
    %p124 = scmp.ne.s32.totalorder %s113, %s114
    %p125 = scmp.eq.s32.totalorder %s17, 0
    %p126 = por %p124, %p125
    %p127 = scmp.ne.s32.totalorder %s113, %s114
    %p128 = scmp.eq.s32.totalorder %s18, 3
    %p129 = por %p127, %p128
    %p131 = scmp.ne.s32.totalorder %s114, %s130
    %p132 = scmp.eq.s32.totalorder %s18, 0
    %p133 = por %p131, %p132
    %s134 = smul.u32 %s19, 2
    %s135 = sadd.s32 %s134, %s20
    %p136 = scmp.lt.s32.totalorder %s135, 3
    %s137 = scalar_select %p136, %s135, 3
    %s138 = smul.u32 %s31, 2
    %s139 = sadd.s32 %s138, %s27
    %p140 = scmp.lt.s32.totalorder %s139, 3
    %s141 = scalar_select %p140, %s139, 3
    %s142 = ssub.s32 %s137, %s141
    %p143 = scmp.eq.s32.totalorder %s142, 0
    %s145 = sadd.s32 %s144, 1
    %s146 = scalar_select %p143, %s144, %s145
    %p149 = pneg %p143
    %p150 = scmp.eq.s32.totalorder %s12, 3
    %p151 = por %p149, %p150
    %p152 = scmp.ne.s32.totalorder %s144, %s147
    %p153 = scmp.eq.s32.totalorder %s12, 0
    %p154 = por %p152, %p153
    %p155 = scmp.ne.s32.totalorder %s144, %s147
    %p156 = scmp.eq.s32.totalorder %s17, 3
    %p157 = por %p155, %p156
    %p158 = scmp.ne.s32.totalorder %s147, %s148
    %p159 = scmp.eq.s32.totalorder %s17, 0
    %p160 = por %p158, %p159
    %p161 = scmp.ne.s32.totalorder %s147, %s148
    %p162 = scmp.eq.s32.totalorder %s18, 3
    %p163 = por %p161, %p162
    %p165 = scmp.ne.s32.totalorder %s148, %s164
    %p166 = scmp.eq.s32.totalorder %s18, 0
    %p167 = por %p165, %p166
    %s168 = ssub.s32 %s19, %s31
    %p169 = scmp.eq.s32.totalorder %s168, 0
    %s171 = sadd.s32 %s170, 1
    %s172 = scalar_select %p169, %s170, %s171
    %p175 = pneg %p169
    %p176 = scmp.eq.s32.totalorder %s12, 3
    %p177 = por %p175, %p176
    %p178 = scmp.ne.s32.totalorder %s170, %s173
    %p179 = scmp.eq.s32.totalorder %s12, 0
    %p180 = por %p178, %p179
    %p181 = scmp.ne.s32.totalorder %s170, %s173
    %p182 = scmp.eq.s32.totalorder %s17, 3
    %p183 = por %p181, %p182
    %p184 = scmp.ne.s32.totalorder %s173, %s174
    %p185 = scmp.eq.s32.totalorder %s17, 0
    %p186 = por %p184, %p185
    %p187 = scmp.ne.s32.totalorder %s173, %s174
    %p188 = scmp.eq.s32.totalorder %s18, 3
    %p189 = por %p187, %p188
    %p191 = scmp.ne.s32.totalorder %s174, %s190
    %p192 = scmp.eq.s32.totalorder %s18, 0
    %p193 = por %p191, %p192
    %s194 = ssub.s32 %s19, %s31
    %p195 = scmp.eq.s32.totalorder %s194, 0
    %s197 = sadd.s32 %s196, 1
    %s198 = scalar_select %p195, %s196, %s197
    %p201 = pneg %p195
    %p202 = scmp.eq.s32.totalorder %s12, 3
    %p203 = por %p201, %p202
    %p204 = scmp.ne.s32.totalorder %s196, %s199
    %p205 = scmp.eq.s32.totalorder %s12, 0
    %p206 = por %p204, %p205
    %p207 = scmp.ne.s32.totalorder %s196, %s199
    %p208 = scmp.eq.s32.totalorder %s17, 3
    %p209 = por %p207, %p208
    %p210 = scmp.ne.s32.totalorder %s199, %s200
    %p211 = scmp.eq.s32.totalorder %s17, 0
    %p212 = por %p210, %p211
    %p213 = scmp.ne.s32.totalorder %s199, %s200
    %p214 = scmp.eq.s32.totalorder %s18, 3
    %p215 = por %p213, %p214
    %p217 = scmp.ne.s32.totalorder %s200, %s216
    %p218 = scmp.eq.s32.totalorder %s18, 0
    %p219 = por %p217, %p218
    %p220 = scmp.le.s32.totalorder 1, %s12
    %p221 = scmp.lt.s32.totalorder %s12, 5
    %p222 = pnand %p220, %p221
    %p223 = pneg %p222
    // Predicated region
    $region9: #{vq_criterion.1} parent=5 // pred_check
      _
    $region10: #{vq_criterion.1} parent=5 // pred_check_branch
      %225 = sbr.rel (%p222) target = $region12
    $region11: #{vq_criterion.1} parent=5 // pred_region
      %s226 = ssub.s32 %s12, 1
    $region12: #{vq_criterion.1} parent=5 // pred_fallthru
      _
    %p227 = scmp.lt.s32.totalorder %s12, 4
    // Predicated region
    $region13: #{vq_criterion.1} parent=5 // pred_check
      %p228 = pneg %p227
    $region14: #{vq_criterion.1} parent=5 // pred_check_branch
      %230 = sbr.rel (%p228) target = $region16
    $region15: #{vq_criterion.1} parent=5 // pred_region
      // Predicated region
      $region17: #{vq_criterion.1} parent=15 // pred_check
        %p231 = pneg %p52
      $region18: #{vq_criterion.1} parent=15 // pred_check_branch
        %233 = sbr.rel (%p231) target = $region20
      $region19: #{vq_criterion.1} parent=15 // pred_region
        %s234 = smul.u32 %s19, 2
        %s235 = sadd.s32 %s234, %s20
        %p236 = scmp.lt.s32.totalorder %s235, 2
        %s237 = scalar_select %p236, %s235, 2
        %s238 = smul.u32 2, %s237
        %p239 = scmp.lt.s32.totalorder %s238, 5
        %s240 = scalar_select %p239, %s238, 5
        %s241 = smul.addr %s240, 2
        %s242 = smul.addr %s241, 8
        %s243 = scalar_lea.vmem %s0, %s242
        %s244 = smul.u32 %s19, 2
        %s245 = sadd.s32 %s244, %s20
        %p246 = scmp.lt.s32.totalorder %s245, 2
        %s247 = scalar_select %p246, %s245, 2
        %s248 = smul.u32 2, %s247
      $region20: #{vq_criterion.1} parent=15 // pred_fallthru
        _
      // Predicated region
      $region21: #{vq_criterion.1} parent=15 // pred_check
        %p249 = pneg %p86
      $region22: #{vq_criterion.1} parent=15 // pred_check_branch
        %251 = sbr.rel (%p249) target = $region24
      $region23: #{vq_criterion.1} parent=15 // pred_region
        %s252 = smul.u32 %s19, 2
        %s253 = sadd.s32 %s252, %s20
        %p254 = scmp.lt.s32.totalorder %s253, 2
        %s255 = scalar_select %p254, %s253, 2
        %s256 = smul.u32 2, %s255
        %p257 = scmp.lt.s32.totalorder %s256, 5
        %s258 = scalar_select %p257, %s256, 5
        %s259 = smul.addr %s258, 2
        %s260 = smul.addr %s259, 8
        %s261 = scalar_lea.vmem %s1, %s260
        %s262 = smul.u32 %s19, 2
        %s263 = sadd.s32 %s262, %s20
        %p264 = scmp.lt.s32.totalorder %s263, 2
        %s265 = scalar_select %p264, %s263, 2
        %s266 = smul.u32 2, %s265
      $region24: #{vq_criterion.1} parent=15 // pred_fallthru
        _
      // Predicated region
      $region25: #{vq_criterion.1} parent=15 // pred_check
        %p267 = pneg %p120
      $region26: #{vq_criterion.1} parent=15 // pred_check_branch
        %269 = sbr.rel (%p267) target = $region28
      $region27: #{vq_criterion.1} parent=15 // pred_region
        %s270 = smul.u32 %s19, 2
        %s271 = sadd.s32 %s270, %s20
        %p272 = scmp.lt.s32.totalorder %s271, 3
        %s273 = scalar_select %p272, %s271, 3
        %s274 = smul.u32 8, %s273
        %p275 = scmp.lt.s32.totalorder %s274, 31
        %s276 = scalar_select %p275, %s274, 31
        %s277 = smul.addr %s276, 2
        %s278 = smul.addr %s277, 8
        %s279 = scalar_lea.vmem %s2, %s278
        %s280 = smul.u32 %s19, 2
        %s281 = sadd.s32 %s280, %s20
        %p282 = scmp.lt.s32.totalorder %s281, 3
        %s283 = scalar_select %p282, %s281, 3
        %s284 = smul.u32 8, %s283
      $region28: #{vq_criterion.1} parent=15 // pred_fallthru
        _
      // Predicated region
      $region29: #{vq_criterion.1} parent=15 // pred_check
        %p285 = pneg %p154
      $region30: #{vq_criterion.1} parent=15 // pred_check_branch
        %287 = sbr.rel (%p285) target = $region32
      $region31: #{vq_criterion.1} parent=15 // pred_region
        %s288 = smul.u32 %s19, 2
        %s289 = sadd.s32 %s288, %s20
        %p290 = scmp.lt.s32.totalorder %s289, 3
        %s291 = scalar_select %p290, %s289, 3
        %s292 = smul.u32 8, %s291
        %p293 = scmp.lt.s32.totalorder %s292, 31
        %s294 = scalar_select %p293, %s292, 31
        %s295 = smul.addr %s294, 2
        %s296 = smul.addr %s295, 8
        %s297 = scalar_lea.vmem %s3, %s296
        %s298 = smul.u32 %s19, 2
        %s299 = sadd.s32 %s298, %s20
        %p300 = scmp.lt.s32.totalorder %s299, 3
        %s301 = scalar_select %p300, %s299, 3
        %s302 = smul.u32 8, %s301
      $region32: #{vq_criterion.1} parent=15 // pred_fallthru
        _
    $region16: #{vq_criterion.1} parent=5 // pred_fallthru
      _
    %p303 = scmp.le.s32.totalorder 1, %s12
    %p304 = scmp.lt.s32.totalorder %s12, 5
    %p305 = pnand %p303, %p304
    %p306 = pneg %p305
    // Predicated region
    $region33: #{vq_criterion.1} parent=5 // pred_check
      _
    $region34: #{vq_criterion.1} parent=5 // pred_check_branch
      %308 = sbr.rel (%p305) target = $region36
    $region35: #{vq_criterion.1} parent=5 // pred_region
      %s309 = ssub.s32 %s12, 1
      %s310 = smul.u32 %s21, 2
      %s311 = sadd.s32 %s310, %s22
      %p312 = scmp.lt.s32.totalorder %s311, 2
      %s313 = scalar_select %p312, %s311, 2
      %s314 = smul.u32 2, %s313
      %p315 = scmp.lt.s32.totalorder %s314, 5
      %s316 = scalar_select %p315, %s314, 5
      %s317 = smul.addr %s316, 2
      %s318 = smul.addr %s317, 8
      %s319 = scalar_lea.vmem %s0, %s318
      %p320 = pneg %p58
      %p321 = pneg %p55
      %s322 = smul.u32 %s21, 2
      %s323 = sadd.s32 %s322, %s22
      %p324 = scmp.lt.s32.totalorder %s323, 2
      %s325 = scalar_select %p324, %s323, 2
      %s326 = smul.u32 2, %s325
      %p327 = scmp.lt.s32.totalorder %s326, 5
      %s328 = scalar_select %p327, %s326, 5
      %s329 = smul.addr %s328, 2
      %s330 = smul.addr %s329, 8
      %s331 = scalar_lea.vmem %s1, %s330
      %p332 = pneg %p92
      %p333 = pneg %p89
      %s334 = smul.u32 %s21, 2
      %s335 = sadd.s32 %s334, %s22
      %p336 = scmp.lt.s32.totalorder %s335, 3
      %s337 = scalar_select %p336, %s335, 3
      %s338 = smul.u32 8, %s337
      %p339 = scmp.lt.s32.totalorder %s338, 31
      %s340 = scalar_select %p339, %s338, 31
      %s341 = smul.addr %s340, 2
      %s342 = smul.addr %s341, 8
      %s343 = scalar_lea.vmem %s2, %s342
      %p344 = pneg %p126
      %p345 = pneg %p123
      %s346 = smul.u32 %s21, 2
      %s347 = sadd.s32 %s346, %s22
      %p348 = scmp.lt.s32.totalorder %s347, 3
      %s349 = scalar_select %p348, %s347, 3
      %s350 = smul.u32 8, %s349
      %p351 = scmp.lt.s32.totalorder %s350, 31
      %s352 = scalar_select %p351, %s350, 31
      %s353 = smul.addr %s352, 2
      %s354 = smul.addr %s353, 8
      %s355 = scalar_lea.vmem %s3, %s354
      %p356 = pneg %p160
      %p357 = pneg %p157
      %p358 = pneg %p186
      %p359 = pneg %p183
      %p360 = scmp.lt.s32.totalorder %s21, 1
      %s361 = scalar_select %p360, %s21, 1
      %s362 = scalar_lea.vmem %s4, %s361
      %p363 = pneg %p212
      %p364 = pneg %p209
      %p365 = scmp.lt.s32.totalorder %s21, 1
      %s366 = scalar_select %p365, %s21, 1
      %s367 = scalar_lea.vmem %s5, %s366
      %s368 = smul.u32 %s21, 2
      %s369 = sadd.s32 %s368, %s22
      %p370 = scmp.lt.s32.totalorder %s369, 2
      %s371 = scalar_select %p370, %s369, 2
      %s372 = smul.u32 2, %s371
      %p373 = scmp.lt.s32.totalorder %s372, 5
      %s374 = scalar_select %p373, %s372, 5
      %s375 = smul.addr %s374, 2
      %s376 = smul.addr %s375, 8
      %s377 = scalar_lea.vmem %s0, %s376
      %s378 = smul.u32 %s21, 2
      %s379 = sadd.s32 %s378, %s22
      %p380 = scmp.lt.s32.totalorder %s379, 2
      %s381 = scalar_select %p380, %s379, 2
      %s382 = smul.u32 2, %s381
      %s383 = smul.u32 %s21, 2
      %s384 = sadd.s32 %s383, %s22
      %p385 = scmp.lt.s32.totalorder %s384, 2
      %s386 = scalar_select %p385, %s384, 2
      %s387 = smul.u32 2, %s386
      %p388 = scmp.lt.s32.totalorder %s387, 5
      %s389 = scalar_select %p388, %s387, 5
      %s390 = smul.addr %s389, 2
      %s391 = smul.addr %s390, 8
      %s392 = scalar_lea.vmem %s1, %s391
      %s393 = smul.u32 %s21, 2
      %s394 = sadd.s32 %s393, %s22
      %p395 = scmp.lt.s32.totalorder %s394, 2
      %s396 = scalar_select %p395, %s394, 2
      %s397 = smul.u32 2, %s396
      %s398 = smul.u32 %s21, 2
      %s399 = sadd.s32 %s398, %s22
      %p400 = scmp.lt.s32.totalorder %s399, 3
      %s401 = scalar_select %p400, %s399, 3
      %s402 = smul.u32 8, %s401
      %p403 = scmp.lt.s32.totalorder %s402, 31
      %s404 = scalar_select %p403, %s402, 31
      %s405 = smul.addr %s404, 2
      %s406 = smul.addr %s405, 8
      %s407 = scalar_lea.vmem %s2, %s406
      %s408 = smul.u32 %s21, 2
      %s409 = sadd.s32 %s408, %s22
      %p410 = scmp.lt.s32.totalorder %s409, 3
      %s411 = scalar_select %p410, %s409, 3
      %s412 = smul.u32 8, %s411
      %s413 = smul.u32 %s21, 2
      %s414 = sadd.s32 %s413, %s22
      %p415 = scmp.lt.s32.totalorder %s414, 3
      %s416 = scalar_select %p415, %s414, 3
      %s417 = smul.u32 8, %s416
      %p418 = scmp.lt.s32.totalorder %s417, 31
      %s419 = scalar_select %p418, %s417, 31
      %s420 = smul.addr %s419, 2
      %s421 = smul.addr %s420, 8
      %s422 = scalar_lea.vmem %s3, %s421
      %s423 = smul.u32 %s21, 2
      %s424 = sadd.s32 %s423, %s22
      %p425 = scmp.lt.s32.totalorder %s424, 3
      %s426 = scalar_select %p425, %s424, 3
      %s427 = smul.u32 8, %s426
      %p428 = scmp.lt.s32.totalorder %s21, 1
      %s429 = scalar_select %p428, %s21, 1
      %s430 = scalar_lea.vmem %s4, %s429
      %p431 = scmp.lt.s32.totalorder %s21, 1
      %s432 = scalar_select %p431, %s21, 1
      %s433 = scalar_lea.vmem %s5, %s432
      %s434 = smul.u32 %s21, 2
      %s435 = sadd.s32 %s434, %s22
      %p436 = scmp.eq.s32.totalorder %s22, 0
      // Predicated region
      $region37: #{vq_criterion.1} parent=35 // pred_check
        %p437 = pneg %p436
      $region38: #{vq_criterion.1} parent=35 // pred_check_branch
        %439 = sbr.rel (%p437) target = $region40
      $region39: #{vq_criterion.1} parent=35 // pred_region
        %vm440 = vcmask 122880
        %441 = vst.msk [vmem:[%s430] sm:$0x1] %vm440, 0.0
        %vm442 = vcmask 57344
        %443 = vst.msk [vmem:[%s433] sm:$0x1] %vm442, 0.0
      $region40: #{vq_criterion.1} parent=35 // pred_fallthru
        _
      %p444 = scmp.lt.s32.totalorder %s435, 3
      // Predicated region
      $region41: #{vq_criterion.1} parent=35 // pred_check
        %p445 = pneg %p444
      $region42: #{vq_criterion.1} parent=35 // pred_check_branch
        %447 = sbr.rel (%p445) target = $region44
      $region43: #{vq_criterion.1} parent=35 // pred_region
        %v448 = vld [vmem:[%s377] sm:$0xff]
        %v449 = vld [vmem:[%s377 + $0x8] sm:$0xff]
        %v450 = vld [vmem:[%s377 + $0x10] sm:$0xff]
        %v451 = vld [vmem:[%s377 + $0x18] sm:$0xff]
        %v452 = vld [vmem:[%s392] sm:$0xff]
        %v453 = vld [vmem:[%s392 + $0x8] sm:$0xff]
        %v454 = vld [vmem:[%s392 + $0x10] sm:$0xff]
        %v455 = vld [vmem:[%s392 + $0x18] sm:$0xff]
        %v456 = vsub.f32 %v448, %v452
        %v457 = vsub.f32 %v449, %v453
        %v458 = vsub.f32 %v450, %v454
        %v459 = vsub.f32 %v451, %v455
        %v460 = vmul.f32 %v456, %v456
        %v461 = vmul.f32 %v457, %v457
        %v462 = vmul.f32 %v458, %v458
        %v463 = vmul.f32 %v459, %v459
        %vm464 = vcmask 130048
        %v465 = vsel %vm464, %v460, 0.0
        %v466 = vsel %vm464, %v462, 0.0
        %v467 = vadd.f32 %v465, %v466
        %v468 = vsel %vm464, %v461, 0.0
        %v469 = vsel %vm464, %v463, 0.0
        %v470 = vadd.f32 %v468, %v469
        %v471 = vld [vmem:[%s430] sm:$0x1]
        %v472 = vsel %vm464, %v467, 0.0
        %v473 = vsel %vm464, %v470, 0.0
        %v474 = vadd.f32 %v472, %v473
        %v475 = vrot.slane %v474, 4
        %v476 = vadd.f32 %v474, %v475
        %v477 = vrot.slane %v476, 2
        %v478 = vadd.f32 %v476, %v477
        %v479 = vrot.slane %v478, 1
        %v480 = vadd.f32 %v478, %v479
        %v481 = vadd.f32 %v471, %v480
        %vm482 = vcmask 122880
        %483 = vst.msk [vmem:[%s430] sm:$0x1] %vm482, %v481
      $region44: #{vq_criterion.1} parent=35 // pred_fallthru
        _
      %p484 = scmp.lt.s32.totalorder %s435, 4
      // Predicated region
      $region45: #{vq_criterion.1} parent=35 // pred_check
        %p485 = pneg %p484
      $region46: #{vq_criterion.1} parent=35 // pred_check_branch
        %487 = sbr.rel (%p485) target = $region48
      $region47: #{vq_criterion.1} parent=35 // pred_region
        %v488 = vld [vmem:[%s407] sm:$0xff]
        %v489 = vld [vmem:[%s407 + $0x8] sm:$0xff]
        %v490 = vld [vmem:[%s407 + $0x10] sm:$0xff]
        %v491 = vld [vmem:[%s407 + $0x18] sm:$0xff]
        %v492 = vld [vmem:[%s407 + $0x20] sm:$0xff]
        %v493 = vld [vmem:[%s407 + $0x28] sm:$0xff]
        %v494 = vld [vmem:[%s407 + $0x30] sm:$0xff]
        %v495 = vld [vmem:[%s407 + $0x38] sm:$0xff]
        %v496 = vld [vmem:[%s407 + $0x40] sm:$0xff]
        %v497 = vld [vmem:[%s407 + $0x48] sm:$0xff]
        %v498 = vld [vmem:[%s407 + $0x50] sm:$0xff]
        %v499 = vld [vmem:[%s407 + $0x58] sm:$0xff]
        %v500 = vld [vmem:[%s407 + $0x60] sm:$0xff]
        %v501 = vld [vmem:[%s407 + $0x68] sm:$0xff]
        %v502 = vld [vmem:[%s407 + $0x70] sm:$0xff]
        %v503 = vld [vmem:[%s407 + $0x78] sm:$0xff]
        %v504 = vld [vmem:[%s422] sm:$0xff]
        %v505 = vld [vmem:[%s422 + $0x8] sm:$0xff]
        %v506 = vld [vmem:[%s422 + $0x10] sm:$0xff]
        %v507 = vld [vmem:[%s422 + $0x18] sm:$0xff]
        %v508 = vld [vmem:[%s422 + $0x20] sm:$0xff]
        %v509 = vld [vmem:[%s422 + $0x28] sm:$0xff]
        %v510 = vld [vmem:[%s422 + $0x30] sm:$0xff]
        %v511 = vld [vmem:[%s422 + $0x38] sm:$0xff]
        %v512 = vld [vmem:[%s422 + $0x40] sm:$0xff]
        %v513 = vld [vmem:[%s422 + $0x48] sm:$0xff]
        %v514 = vld [vmem:[%s422 + $0x50] sm:$0xff]
        %v515 = vld [vmem:[%s422 + $0x58] sm:$0xff]
        %v516 = vld [vmem:[%s422 + $0x60] sm:$0xff]
        %v517 = vld [vmem:[%s422 + $0x68] sm:$0xff]
        %v518 = vld [vmem:[%s422 + $0x70] sm:$0xff]
        %v519 = vld [vmem:[%s422 + $0x78] sm:$0xff]
        %v520 = vsub.f32 %v488, %v504
        %v521 = vsub.f32 %v489, %v505
        %v522 = vsub.f32 %v490, %v506
        %v523 = vsub.f32 %v491, %v507
        %v524 = vsub.f32 %v492, %v508
        %v525 = vsub.f32 %v493, %v509
        %v526 = vsub.f32 %v494, %v510
        %v527 = vsub.f32 %v495, %v511
        %v528 = vsub.f32 %v496, %v512
        %v529 = vsub.f32 %v497, %v513
        %v530 = vsub.f32 %v498, %v514
        %v531 = vsub.f32 %v499, %v515
        %v532 = vsub.f32 %v500, %v516
        %v533 = vsub.f32 %v501, %v517
        %v534 = vsub.f32 %v502, %v518
        %v535 = vsub.f32 %v503, %v519
        %v536 = vmul.f32 %v520, %v520
        %v537 = vmul.f32 %v521, %v521
        %v538 = vmul.f32 %v522, %v522
        %v539 = vmul.f32 %v523, %v523
        %v540 = vmul.f32 %v524, %v524
        %v541 = vmul.f32 %v525, %v525
        %v542 = vmul.f32 %v526, %v526
        %v543 = vmul.f32 %v527, %v527
        %v544 = vmul.f32 %v528, %v528
        %v545 = vmul.f32 %v529, %v529
        %v546 = vmul.f32 %v530, %v530
        %v547 = vmul.f32 %v531, %v531
        %v548 = vmul.f32 %v532, %v532
        %v549 = vmul.f32 %v533, %v533
        %v550 = vmul.f32 %v534, %v534
        %v551 = vmul.f32 %v535, %v535
        %vm552 = vcmask 64512
        %v553 = vsel %vm552, %v536, 0.0
        %v554 = vsel %vm552, %v538, 0.0
        %v555 = vadd.f32 %v553, %v554
        %v556 = vsel %vm552, %v540, 0.0
        %v557 = vadd.f32 %v555, %v556
        %v558 = vsel %vm552, %v542, 0.0
        %v559 = vadd.f32 %v557, %v558
        %v560 = vsel %vm552, %v544, 0.0
        %v561 = vadd.f32 %v559, %v560
        %v562 = vsel %vm552, %v546, 0.0
        %v563 = vadd.f32 %v561, %v562
        %v564 = vsel %vm552, %v548, 0.0
        %v565 = vadd.f32 %v563, %v564
        %v566 = vsel %vm552, %v550, 0.0
        %v567 = vadd.f32 %v565, %v566
        %v568 = vsel %vm552, %v537, 0.0
        %v569 = vsel %vm552, %v539, 0.0
        %v570 = vadd.f32 %v568, %v569
        %v571 = vsel %vm552, %v541, 0.0
        %v572 = vadd.f32 %v570, %v571
        %v573 = vsel %vm552, %v543, 0.0
        %v574 = vadd.f32 %v572, %v573
        %v575 = vsel %vm552, %v545, 0.0
        %v576 = vadd.f32 %v574, %v575
        %v577 = vsel %vm552, %v547, 0.0
        %v578 = vadd.f32 %v576, %v577
        %v579 = vsel %vm552, %v549, 0.0
        %v580 = vadd.f32 %v578, %v579
        %v581 = vsel %vm552, %v551, 0.0
        %v582 = vadd.f32 %v580, %v581
        %v583 = vld [vmem:[%s433] sm:$0x1]
        %v584 = vsel %vm552, %v567, 0.0
        %v585 = vsel %vm552, %v582, 0.0
        %v586 = vadd.f32 %v584, %v585
        %v587 = vrot.slane %v586, 4
        %v588 = vadd.f32 %v586, %v587
        %v589 = vrot.slane %v588, 2
        %v590 = vadd.f32 %v588, %v589
        %v591 = vrot.slane %v590, 1
        %v592 = vadd.f32 %v590, %v591
        %v593 = vadd.f32 %v583, %v592
        %vm594 = vcmask 57344
        %595 = vst.msk [vmem:[%s433] sm:$0x1] %vm594, %v593
      $region48: #{vq_criterion.1} parent=35 // pred_fallthru
        _
      %p596 = scmp.lt.s32.totalorder %s21, 1
      %s597 = scalar_select %p596, %s21, 1
      %s598 = scalar_lea.vmem %s4, %s597
      %p599 = scmp.lt.s32.totalorder %s21, 1
      %s600 = scalar_select %p599, %s21, 1
      %s601 = scalar_lea.vmem %s5, %s600
      // Predicated region
      $region49: #{vq_criterion.1} parent=35 // pred_check
        %p602 = pneg %p183
      $region50: #{vq_criterion.1} parent=35 // pred_check_branch
        %604 = sbr.rel (%p602) target = $region52
      $region51: #{vq_criterion.1} parent=35 // pred_region
        _
      $region52: #{vq_criterion.1} parent=35 // pred_fallthru
        _
      // Predicated region
      $region53: #{vq_criterion.1} parent=35 // pred_check
        %p605 = pneg %p209
      $region54: #{vq_criterion.1} parent=35 // pred_check_branch
        %607 = sbr.rel (%p605) target = $region56
      $region55: #{vq_criterion.1} parent=35 // pred_region
        _
      $region56: #{vq_criterion.1} parent=35 // pred_fallthru
        _
    $region36: #{vq_criterion.1} parent=5 // pred_fallthru
      _
    %p608 = scmp.le.s32.totalorder 2, %s12
    // Predicated region
    $region57: #{vq_criterion.1} parent=5 // pred_check
      %p609 = pneg %p608
    $region58: #{vq_criterion.1} parent=5 // pred_check_branch
      %611 = sbr.rel (%p609) target = $region60
    $region59: #{vq_criterion.1} parent=5 // pred_region
      %s612 = ssub.s32 %s12, 2
      // Predicated region
      $region61: #{vq_criterion.1} parent=59 // pred_check
        %p613 = pneg %p189
      $region62: #{vq_criterion.1} parent=59 // pred_check_branch
        %615 = sbr.rel (%p613) target = $region64
      $region63: #{vq_criterion.1} parent=59 // pred_region
        %p616 = scmp.lt.s32.totalorder %s23, 1
        %s617 = scalar_select %p616, %s23, 1
        %s618 = scalar_lea.vmem %s4, %s617
      $region64: #{vq_criterion.1} parent=59 // pred_fallthru
        _
      // Predicated region
      $region65: #{vq_criterion.1} parent=59 // pred_check
        %p619 = pneg %p215
      $region66: #{vq_criterion.1} parent=59 // pred_check_branch
        %621 = sbr.rel (%p619) target = $region68
      $region67: #{vq_criterion.1} parent=59 // pred_region
        %p622 = scmp.lt.s32.totalorder %s23, 1
        %s623 = scalar_select %p622, %s23, 1
        %s624 = scalar_lea.vmem %s5, %s623
      $region68: #{vq_criterion.1} parent=59 // pred_fallthru
        _
    $region60: #{vq_criterion.1} parent=5 // pred_fallthru
      _
  $region6: #{vq_criterion.1} parent=0 // loop_footer
    %s16 = sadd.s32 1, %s12
  $region7: #{vq_criterion.1} parent=0 // loop_footer_branch
    %11 = sbr.rel target = $region3
  $region8: #{vq_criterion.1} parent=0 // loop_exit
    _

</llo_original>
